<compile_context>
chip_gen: v5e
topology: v5e:2x2
jax: 0.10.0
libtpu: 0.0.40
codegen_flags: <defaults>
</compile_context>

<pallas_src>
import jax
import jax.numpy as jnp
from jax.experimental import pallas as pl
from jax.experimental.pallas import tpu as pltpu

HIST_DIM = 1280                    # flattened history-model body output (use_summarizer=False)
EMB_DIM = 768                      # article_id_fixed embedding dim
USER_DIM = 8                       # user_feature_dim (ovewrite_meta_model=True)
HIDDEN = 64                        # classify[0] out_features
MAX_INVIEW = 8
HU_DIM = HIST_DIM + USER_DIM       # 1288 = [hist | user/100]
CLS_IN = EMB_DIM + HU_DIM          # 2056 = classifier_input_dim


def _pci_kernel(emb_ref, histu_ref, w1e_ref, w1hu_ref, b1_ref, w2_ref, b2_ref, out_ref):
    # emb_ref  : (TB, I, 768)  bf16 inview embeddings
    # histu_ref: (TB, 1288)    bf16 [encoded_history | user_features/100]
    # w1e_ref  : (768, 64)     bf16   w1hu_ref: (1288, 64) bf16
    # b1_ref   : (1, 64) f32   w2_ref: (1, 64) f32 (second layer, transposed)
    # b2_ref   : (1, 1)  f32   out_ref: (TB, I) f32
    tb, I, E = emb_ref.shape

    # Layer 1, embedding part: one big MXU matmul over all TB*I rows (bf16 in, f32 acc).
    emb2d = emb_ref[...].reshape(tb * I, E)
    h_e = jnp.dot(emb2d, w1e_ref[...], preferred_element_type=jnp.float32)          # (TB*I, 64)

    # Layer 1, [hist | user/100] part: one row per batch element, broadcast over inviews
    # (this is the torch unsqueeze(1).expand(...) folded into a broadcast-add).
    h_hu = jnp.dot(histu_ref[...], w1hu_ref[...], preferred_element_type=jnp.float32)  # (TB, 64)

    h = h_e.reshape(tb, I, HIDDEN) + h_hu[:, None, :] + b1_ref[...]                 # (TB, I, 64)
    h = jnp.maximum(h, 0.0)                                                         # ReLU

    # Layer 2 (64 -> 1) as VPU multiply + lane reduction (MXU with N=1 is pure overhead).
    out_ref[...] = jnp.sum(h * w2_ref[...], axis=-1) + b2_ref[...]                  # (TB, I)


def predict_clicked_inview(encoded_history, user_features, inview_emb, w1, b1, w2, b2,
                           *, tb=256):
    B, I, _ = inview_emb.shape

    # torch.cat((encoded_history, user_features / 100.0), dim=1); broadcast over inviews
    # happens inside the kernel.  Heavy operands go to bf16 (f32 accumulation in-kernel).
    histu = jnp.concatenate(
        [encoded_history, user_features * (1.0 / 100.0)], axis=1).astype(jnp.bfloat16)
    emb = inview_emb.astype(jnp.bfloat16)

    # Split classifier weight 1 by the concat layout [emb(768) | hist(1280) | user(8)];
    # hist and user halves are fused into one (1288, 64) weight.
    w1e = w1[:EMB_DIM].astype(jnp.bfloat16)
    w1hu = w1[EMB_DIM:].astype(jnp.bfloat16)
    b1_r = b1.reshape(1, HIDDEN).astype(jnp.float32)
    w2_row = w2.reshape(HIDDEN, 1).T.astype(jnp.float32)        # (1, 64)
    b2_r = b2.reshape(1, 1).astype(jnp.float32)

    # Batch TB elements per grid step; pad B up to a multiple of TB if needed.
    tb = min(tb, B)
    if B > tb and tb % 8 != 0:
        tb = max(8, (tb // 8) * 8)
    n_steps = pl.cdiv(B, tb)
    B_pad = n_steps * tb
    if B_pad != B:
        emb = jnp.pad(emb, ((0, B_pad - B), (0, 0), (0, 0)))
        histu = jnp.pad(histu, ((0, B_pad - B), (0, 0)))

    out = pl.pallas_call(
        _pci_kernel,
        out_shape=jax.ShapeDtypeStruct((B_pad, I), jnp.float32),
        grid_spec=pltpu.PrefetchScalarGridSpec(
            num_scalar_prefetch=0,
            grid=(n_steps,),
            in_specs=[
                pl.BlockSpec((tb, I, EMB_DIM), lambda b: (b, 0, 0)),
                pl.BlockSpec((tb, HU_DIM), lambda b: (b, 0)),
                pl.BlockSpec((EMB_DIM, HIDDEN), lambda b: (0, 0)),
                pl.BlockSpec((HU_DIM, HIDDEN), lambda b: (0, 0)),
                pl.BlockSpec((1, HIDDEN), lambda b: (0, 0)),
                pl.BlockSpec((1, HIDDEN), lambda b: (0, 0)),
                pl.BlockSpec((1, 1), lambda b: (0, 0)),
            ],
            out_specs=pl.BlockSpec((tb, I), lambda b: (b, 0)),
        ),
        compiler_params=pltpu.CompilerParams(dimension_semantics=("parallel",)),
    )(emb, histu, w1e, w1hu, b1_r, w2_row, b2_r)
    return out[:B]


def _linear_init(key, fan_in, fan_out):
    # Matches torch.nn.Linear default: U(-1/sqrt(fan_in), 1/sqrt(fan_in))
    kw, kb = jax.random.split(key)
    bound = 1.0 / jnp.sqrt(fan_in)
    w = jax.random.uniform(kw, (fan_in, fan_out), jnp.float32, -bound, bound)
    b = jax.random.uniform(kb, (1, fan_out), jnp.float32, -bound, bound)
    return w, b


if __name__ == "__main__":
    B = 2
    I = MAX_INVIEW          # inviews.size(1) == max_inview
    VOCAB = 32

    key = jax.random.PRNGKey(0)
    k_hist, k_user, k_emb, k_ids, k_len, k_l1, k_l2 = jax.random.split(key, 7)

    # TODO(synk): the frozen external history_model.heads[0].body transformer is
    # unspecified; its flattened (B, 1280) output is supplied directly as an input.
    encoded_history = jax.random.normal(k_hist, (B, HIST_DIM), jnp.float32)
    user_features = jax.random.normal(k_user, (B, USER_DIM), jnp.float32) * 50.0
    inviews = jax.random.randint(k_ids, (B, I), 0, VOCAB, dtype=jnp.int32)
    length = jax.random.randint(k_len, (B,), 1, I + 1, dtype=jnp.int32)

    # Synthetic stand-in for embedding_tables.article_id_fixed (vocab, 768).
    # The gather stays as plain-JAX glue; fusing it into the kernel (scalar-prefetch ids +
    # per-row DMA gather) would save an HBM round-trip on the (B, I, 768) tensor.
    emb_table = jax.random.normal(k_emb, (VOCAB, EMB_DIM), jnp.float32) * 0.02
    inview_emb = jnp.take(emb_table, inviews, axis=0)           # (B, I, 768)

    # Mask computed in the original forward but never applied to the output;
    # reproduced here for fidelity (and likewise unused).
    mask = ~(jnp.arange(MAX_INVIEW)[None, :] < length[:, None])
    del mask

    # classify = Linear(CLS_IN, 64) -> ReLU -> Linear(64, 1)
    w1, b1 = _linear_init(k_l1, CLS_IN, HIDDEN)
    w2, b2 = _linear_init(k_l2, HIDDEN, 1)

    out = predict_clicked_inview(encoded_history, user_features, inview_emb,
                                 w1, b1, w2, b2)
    out = jax.block_until_ready(out)

    # Reference (plain JAX, f32) of the exact forward semantics.
    enc_hist_full = jnp.concatenate([encoded_history, user_features / 100.0], axis=1)  # (B, 1288)
    enc_hist_exp = jnp.broadcast_to(enc_hist_full[:, None, :], (B, I, HU_DIM))
    full_concat = jnp.concatenate([inview_emb, enc_hist_exp], axis=2)                  # (B, I, 2056)
    ref_h = jnp.maximum(full_concat @ w1 + b1[0], 0.0)
    ref = (ref_h @ w2 + b2[0])[..., 0]                                                 # (B, I)

    assert out.shape == (B, I)
    # bf16 operands (f32 accumulation) vs the pure-f32 reference -> loose tolerance.
    assert jnp.allclose(out, ref, rtol=5e-2, atol=5e-2), "mismatch vs reference"

    print("KERNEL_OK")
</pallas_src>

<mosaic_0001>
module attributes {stable_mosaic.version = 11 : i64} {
  func.func @_pci_kernel(%arg0: i32, %arg1: memref<2x8x768xbf16, #tpu.memory_space<vmem>>, %arg2: memref<2x1288xbf16, #tpu.memory_space<vmem>>, %arg3: memref<768x64xbf16, #tpu.memory_space<vmem>>, %arg4: memref<1288x64xbf16, #tpu.memory_space<vmem>>, %arg5: memref<1x64xf32, #tpu.memory_space<vmem>>, %arg6: memref<1x64xf32, #tpu.memory_space<vmem>>, %arg7: memref<1x1xf32, #tpu.memory_space<vmem>>, %arg8: memref<2x8xf32, #tpu.memory_space<vmem>>) attributes {dimension_semantics = [#tpu.dimension_semantics<parallel>], iteration_bounds = array<i64: 1>, scalar_prefetch = 0 : i64, scratch_operands = 0 : i64, tpu.core_type = #tpu.core_type<tc>, window_params = [{transform_indices = @transform_0, window_bounds = array<i64: 2, 8, 768>}, {transform_indices = @transform_1, window_bounds = array<i64: 2, 1288>}, {pipeline_mode = #tpu.pipeline_mode<synchronous>, transform_indices = @transform_2, window_bounds = array<i64: 768, 64>}, {pipeline_mode = #tpu.pipeline_mode<synchronous>, transform_indices = @transform_3, window_bounds = array<i64: 1288, 64>}, {pipeline_mode = #tpu.pipeline_mode<synchronous>, transform_indices = @transform_4, window_bounds = array<i64: 1, 64>}, {pipeline_mode = #tpu.pipeline_mode<synchronous>, transform_indices = @transform_5, window_bounds = array<i64: 1, 64>}, {pipeline_mode = #tpu.pipeline_mode<synchronous>, transform_indices = @transform_6, window_bounds = array<i64: 1, 1>}, {transform_indices = @transform_7, window_bounds = array<i64: 2, 8>}]} {
    %c0 = arith.constant 0 : index
    %c0_0 = arith.constant 0 : index
    %c0_1 = arith.constant 0 : index
    %0 = vector.load %arg1[%c0, %c0_0, %c0_1] : memref<2x8x768xbf16, #tpu.memory_space<vmem>>, vector<2x8x768xbf16>
    %1 = vector.shape_cast %0 : vector<2x8x768xbf16> to vector<16x768xbf16>
    %c0_2 = arith.constant 0 : index
    %c0_3 = arith.constant 0 : index
    %2 = vector.load %arg3[%c0_2, %c0_3] : memref<768x64xbf16, #tpu.memory_space<vmem>>, vector<768x64xbf16>
    %cst = arith.constant dense<0.000000e+00> : vector<16x64xf32>
    %3 = tpu.matmul %1, %2, %cst {dimension_numbers = #tpu.dot_dimension_numbers<[1], [0], [0], [1], [0, 0, 1, 1], [], []>} : vector<16x768xbf16>, vector<768x64xbf16>, vector<16x64xf32> -> vector<16x64xf32>
    %c0_4 = arith.constant 0 : index
    %c0_5 = arith.constant 0 : index
    %4 = vector.load %arg2[%c0_4, %c0_5] : memref<2x1288xbf16, #tpu.memory_space<vmem>>, vector<2x1288xbf16>
    %c0_6 = arith.constant 0 : index
    %c0_7 = arith.constant 0 : index
    %5 = vector.load %arg4[%c0_6, %c0_7] : memref<1288x64xbf16, #tpu.memory_space<vmem>>, vector<1288x64xbf16>
    %cst_8 = arith.constant dense<0.000000e+00> : vector<2x64xf32>
    %6 = tpu.matmul %4, %5, %cst_8 {dimension_numbers = #tpu.dot_dimension_numbers<[1], [0], [0], [1], [0, 0, 1, 1], [], []>} : vector<2x1288xbf16>, vector<1288x64xbf16>, vector<2x64xf32> -> vector<2x64xf32>
    %7 = vector.shape_cast %3 : vector<16x64xf32> to vector<2x8x64xf32>
    %8 = vector.shape_cast %6 : vector<2x64xf32> to vector<2x1x64xf32>
    %9 = vector.broadcast %8 : vector<2x1x64xf32> to vector<2x8x64xf32>
    %10 = arith.addf %7, %9 : vector<2x8x64xf32>
    %c0_9 = arith.constant 0 : index
    %c0_10 = arith.constant 0 : index
    %11 = vector.load %arg5[%c0_9, %c0_10] : memref<1x64xf32, #tpu.memory_space<vmem>>, vector<1x64xf32>
    %12 = vector.shape_cast %11 : vector<1x64xf32> to vector<1x1x64xf32>
    %13 = vector.broadcast %12 : vector<1x1x64xf32> to vector<2x8x64xf32>
    %14 = arith.addf %10, %13 : vector<2x8x64xf32>
    %cst_11 = arith.constant 0.000000e+00 : f32
    %15 = vector.broadcast %cst_11 : f32 to vector<2x8x64xf32>
    %16 = arith.maximumf %14, %15 : vector<2x8x64xf32>
    %c0_12 = arith.constant 0 : index
    %c0_13 = arith.constant 0 : index
    %17 = vector.load %arg6[%c0_12, %c0_13] : memref<1x64xf32, #tpu.memory_space<vmem>>, vector<1x64xf32>
    %18 = vector.shape_cast %17 : vector<1x64xf32> to vector<1x1x64xf32>
    %19 = vector.broadcast %18 : vector<1x1x64xf32> to vector<2x8x64xf32>
    %20 = arith.mulf %16, %19 : vector<2x8x64xf32>
    %cst_14 = arith.constant dense<0.000000e+00> : vector<2x8xf32>
    %21 = vector.multi_reduction <add>, %20, %cst_14 [2] : vector<2x8x64xf32> to vector<2x8xf32>
    %c0_15 = arith.constant 0 : index
    %c0_16 = arith.constant 0 : index
    %22 = vector.load %arg7[%c0_15, %c0_16] : memref<1x1xf32, #tpu.memory_space<vmem>>, vector<1x1xf32>
    %23 = vector.broadcast %22 : vector<1x1xf32> to vector<2x8xf32>
    %24 = arith.addf %21, %23 : vector<2x8xf32>
    %c0_17 = arith.constant 0 : index
    %c0_18 = arith.constant 0 : index
    %25 = vector.load %arg8[%c0_17, %c0_18] : memref<2x8xf32, #tpu.memory_space<vmem>>, vector<2x8xf32>
    tpu.vector_store %arg8[%c0_17, %c0_18], %24 {strides = array<i32>} : memref<2x8xf32, #tpu.memory_space<vmem>>, vector<2x8xf32>,
    return
  }
  func.func @transform_0(%arg0: i32) -> (i32, i32, i32) {
    %c0_i32 = arith.constant 0 : i32
    %c0_i32_0 = arith.constant 0 : i32
    %c0_i32_1 = arith.constant 0 : i32
    return %arg0, %c0_i32, %c0_i32_0 : i32, i32, i32
  }
  func.func @transform_1(%arg0: i32) -> (i32, i32) {
    %c0_i32 = arith.constant 0 : i32
    %c0_i32_0 = arith.constant 0 : i32
    return %arg0, %c0_i32 : i32, i32
  }
  func.func @transform_2(%arg0: i32) -> (i32, i32) {
    %c0_i32 = arith.constant 0 : i32
    %c0_i32_0 = arith.constant 0 : i32
    %c0_i32_1 = arith.constant 0 : i32
    return %c0_i32, %c0_i32_0 : i32, i32
  }
  func.func @transform_3(%arg0: i32) -> (i32, i32) {
    %c0_i32 = arith.constant 0 : i32
    %c0_i32_0 = arith.constant 0 : i32
    %c0_i32_1 = arith.constant 0 : i32
    return %c0_i32, %c0_i32_0 : i32, i32
  }
  func.func @transform_4(%arg0: i32) -> (i32, i32) {
    %c0_i32 = arith.constant 0 : i32
    %c0_i32_0 = arith.constant 0 : i32
    %c0_i32_1 = arith.constant 0 : i32
    return %c0_i32, %c0_i32_0 : i32, i32
  }
  func.func @transform_5(%arg0: i32) -> (i32, i32) {
    %c0_i32 = arith.constant 0 : i32
    %c0_i32_0 = arith.constant 0 : i32
    %c0_i32_1 = arith.constant 0 : i32
    return %c0_i32, %c0_i32_0 : i32, i32
  }
  func.func @transform_6(%arg0: i32) -> (i32, i32) {
    %c0_i32 = arith.constant 0 : i32
    %c0_i32_0 = arith.constant 0 : i32
    %c0_i32_1 = arith.constant 0 : i32
    return %c0_i32, %c0_i32_0 : i32, i32
  }
  func.func @transform_7(%arg0: i32) -> (i32, i32) {
    %c0_i32 = arith.constant 0 : i32
    %c0_i32_0 = arith.constant 0 : i32
    return %arg0, %c0_i32 : i32, i32
  }
}

</mosaic_0001>

<llo_original>
// kernel: tpu_custom_call.1
$region0: #{tpu_custom_call.1}
  #allocation0 [shape = 'u32[]', space=smem, size = 0x4, offset = 0x4, fixed_abs, tag = 'smem constant byte address 0x4 - core index']
  #allocation1 [shape = 'u32[72,128]{1,0:T(1,128)}', space=vmem, size = 0x9000, scoped, tag = 'internal scratch']
  #allocation2 [shape = 'f32[1,1]{1,0:T(1,128)S(1)}', space=vmem, size = 0x200, scoped, tag = 'scoped memory for tpu_custom_call.1']
  %s0 = inlined_call_operand.vmem [shape: bf16[2,8,768], index: 0, kind: input, shape index: {}]
  %s1 = inlined_call_operand.vmem [shape: bf16[2,1288], index: 1, kind: input, shape index: {}]
  %s2 = inlined_call_operand.vmem [shape: bf16[768,64], index: 2, kind: input, shape index: {}]
  %s3 = inlined_call_operand.vmem [shape: bf16[1288,64], index: 3, kind: input, shape index: {}]
  %s4 = inlined_call_operand.vmem [shape: f32[1,64], index: 4, kind: input, shape index: {}]
  %s5 = inlined_call_operand.vmem [shape: f32[1,64], index: 5, kind: input, shape index: {}]
  %s6 = inlined_call_operand.<no memory space> [shape: f32[1,1], index: 6, kind: input, shape index: {}]
  %s7 = inlined_call_operand.hbm [shape: f32[2,8], index: 7, kind: output, shape index: {}]
  %s8 = sld [smem:[#allocation0]]
  $region38: #{tpu_custom_call.1} parent=0
    _
  %s10 = ssub.s32 1, %s8
  %s11 = scalar_select 0, %s10, %s8
  %v12 = vstv %s6
  %13 = vst [vmem:[#allocation2] sm:$0x1] %v12
  $region1: #{tpu_custom_call.1} parent=0
    #allocation3 [shape = 'u8[1024]{0}', space=vmem, size = 0x400, scoped, tag = 'output window, operand 0, single buffered']
    #allocation4 [shape = 's32[1]{0}', space=sflag, size = 0x4, scoped, tag = 'scoped memory for tpu_custom_call.1']
    %14 = vsyncpa [#allocation4], 0
    // Predicated region
    $region2: #{tpu_custom_call.1} parent=1 // pred_check
      _
    $region3: #{tpu_custom_call.1} parent=1 // pred_check_branch
      %16 = sbr.rel (0) target = $region5
    $region4: #{tpu_custom_call.1} parent=1 // pred_region
      _
    $region5: #{tpu_custom_call.1} parent=1 // pred_fallthru
      _
    // Predicated region
    $region6: #{tpu_custom_call.1} parent=1 // pred_check
      _
    $region7: #{tpu_custom_call.1} parent=1 // pred_check_branch
      %18 = sbr.rel (0) target = $region9
    $region8: #{tpu_custom_call.1} parent=1 // pred_region
      _
    $region9: #{tpu_custom_call.1} parent=1 // pred_fallthru
      _
    // Predicated region
    $region10: #{tpu_custom_call.1} parent=1 // pred_check
      _
    $region11: #{tpu_custom_call.1} parent=1 // pred_check_branch
      %20 = sbr.rel (0) target = $region13
    $region12: #{tpu_custom_call.1} parent=1 // pred_region
      _
    $region13: #{tpu_custom_call.1} parent=1 // pred_fallthru
      _
    // Predicated region
    $region14: #{tpu_custom_call.1} parent=1 // pred_check
      _
    $region15: #{tpu_custom_call.1} parent=1 // pred_check_branch
      %22 = sbr.rel (0) target = $region17
    $region16: #{tpu_custom_call.1} parent=1 // pred_region
      _
    $region17: #{tpu_custom_call.1} parent=1 // pred_fallthru
      _
    // Predicated region
    $region18: #{tpu_custom_call.1} parent=1 // pred_check
      _
    $region19: #{tpu_custom_call.1} parent=1 // pred_check_branch
      %24 = sbr.rel (0) target = $region21
    $region20: #{tpu_custom_call.1} parent=1 // pred_region
      _
    $region21: #{tpu_custom_call.1} parent=1 // pred_fallthru
      _
    // Predicated region
    $region22: #{tpu_custom_call.1} parent=1 // pred_check
      _
    $region23: #{tpu_custom_call.1} parent=1 // pred_check_branch
      %26 = sbr.rel (0) target = $region25
    $region24: #{tpu_custom_call.1} parent=1 // pred_region
      _
    $region25: #{tpu_custom_call.1} parent=1 // pred_fallthru
      _
    // Predicated region
    $region26: #{tpu_custom_call.1} parent=1 // pred_check
      _
    $region27: #{tpu_custom_call.1} parent=1 // pred_check_branch
      %28 = sbr.rel (0) target = $region29
    $region28: #{tpu_custom_call.1} parent=1 // pred_region
      _
    $region29: #{tpu_custom_call.1} parent=1 // pred_fallthru
      _
    %v30 = vld [vmem:[%s0] sm:$0xff]
    %v31 = vld [vmem:[%s0 + $0x8] sm:$0xff]
    %v32 = vld [vmem:[%s0 + $0x10] sm:$0xff]
    %v33 = vld [vmem:[%s0 + $0x18] sm:$0xff]
    %v34 = vld [vmem:[%s0 + $0x20] sm:$0xff]
    %v35 = vld [vmem:[%s0 + $0x28] sm:$0xff]
    %v36 = vld [vmem:[%s2] sm:$0xf]
    %v37 = vld [vmem:[%s2 + $0x4] sm:$0xf]
    %v38 = vld [vmem:[%s2 + $0x8] sm:$0xf]
    %v39 = vld [vmem:[%s2 + $0xc] sm:$0xf]
    %v40 = vld [vmem:[%s2 + $0x10] sm:$0xf]
    %v41 = vld [vmem:[%s2 + $0x14] sm:$0xf]
    %v42 = vld [vmem:[%s2 + $0x18] sm:$0xf]
    %v43 = vld [vmem:[%s2 + $0x1c] sm:$0xf]
    %v44 = vld [vmem:[%s2 + $0x20] sm:$0xf]
    %v45 = vld [vmem:[%s2 + $0x24] sm:$0xf]
    %v46 = vld [vmem:[%s2 + $0x28] sm:$0xf]
    %v47 = vld [vmem:[%s2 + $0x2c] sm:$0xf]
    %v48 = vld [vmem:[%s2 + $0x30] sm:$0xf]
    %v49 = vld [vmem:[%s2 + $0x34] sm:$0xf]
    %v50 = vld [vmem:[%s2 + $0x38] sm:$0xf]
    %v51 = vld [vmem:[%s2 + $0x3c] sm:$0xf]
    %v52 = vld [vmem:[%s2 + $0x40] sm:$0xf]
    %v53 = vld [vmem:[%s2 + $0x44] sm:$0xf]
    %v54 = vld [vmem:[%s2 + $0x48] sm:$0xf]
    %v55 = vld [vmem:[%s2 + $0x4c] sm:$0xf]
    %v56 = vld [vmem:[%s2 + $0x50] sm:$0xf]
    %v57 = vld [vmem:[%s2 + $0x54] sm:$0xf]
    %v58 = vld [vmem:[%s2 + $0x58] sm:$0xf]
    %v59 = vld [vmem:[%s2 + $0x5c] sm:$0xf]
    %v60 = vld [vmem:[%s2 + $0x60] sm:$0xf]
    %v61 = vld [vmem:[%s2 + $0x64] sm:$0xf]
    %v62 = vld [vmem:[%s2 + $0x68] sm:$0xf]
    %v63 = vld [vmem:[%s2 + $0x6c] sm:$0xf]
    %v64 = vld [vmem:[%s2 + $0x70] sm:$0xf]
    %v65 = vld [vmem:[%s2 + $0x74] sm:$0xf]
    %v66 = vld [vmem:[%s2 + $0x78] sm:$0xf]
    %v67 = vld [vmem:[%s2 + $0x7c] sm:$0xf]
    %v68 = vld [vmem:[%s2 + $0x80] sm:$0xf]
    %v69 = vld [vmem:[%s2 + $0x84] sm:$0xf]
    %v70 = vld [vmem:[%s2 + $0x88] sm:$0xf]
    %v71 = vld [vmem:[%s2 + $0x8c] sm:$0xf]
    %v72 = vld [vmem:[%s2 + $0x90] sm:$0xf]
    %v73 = vld [vmem:[%s2 + $0x94] sm:$0xf]
    %v74 = vld [vmem:[%s2 + $0x98] sm:$0xf]
    %v75 = vld [vmem:[%s2 + $0x9c] sm:$0xf]
    %v76 = vld [vmem:[%s2 + $0xa0] sm:$0xf]
    %v77 = vld [vmem:[%s2 + $0xa4] sm:$0xf]
    %v78 = vld [vmem:[%s2 + $0xa8] sm:$0xf]
    %v79 = vld [vmem:[%s2 + $0xac] sm:$0xf]
    %v80 = vld [vmem:[%s2 + $0xb0] sm:$0xf]
    %v81 = vld [vmem:[%s2 + $0xb4] sm:$0xf]
    %v82 = vld [vmem:[%s2 + $0xb8] sm:$0xf]
    %v83 = vld [vmem:[%s2 + $0xbc] sm:$0xf]
    %v84 = vld [vmem:[%s2 + $0xc0] sm:$0xf]
    %v85 = vld [vmem:[%s2 + $0xc4] sm:$0xf]
    %v86 = vld [vmem:[%s2 + $0xc8] sm:$0xf]
    %v87 = vld [vmem:[%s2 + $0xcc] sm:$0xf]
    %v88 = vld [vmem:[%s2 + $0xd0] sm:$0xf]
    %v89 = vld [vmem:[%s2 + $0xd4] sm:$0xf]
    %v90 = vld [vmem:[%s2 + $0xd8] sm:$0xf]
    %v91 = vld [vmem:[%s2 + $0xdc] sm:$0xf]
    %v92 = vld [vmem:[%s2 + $0xe0] sm:$0xf]
    %v93 = vld [vmem:[%s2 + $0xe4] sm:$0xf]
    %v94 = vld [vmem:[%s2 + $0xe8] sm:$0xf]
    %v95 = vld [vmem:[%s2 + $0xec] sm:$0xf]
    %v96 = vld [vmem:[%s2 + $0xf0] sm:$0xf]
    %v97 = vld [vmem:[%s2 + $0xf4] sm:$0xf]
    %v98 = vld [vmem:[%s2 + $0xf8] sm:$0xf]
    %v99 = vld [vmem:[%s2 + $0xfc] sm:$0xf]
    %v100 = vld [vmem:[%s2 + $0x100] sm:$0xf]
    %v101 = vld [vmem:[%s2 + $0x104] sm:$0xf]
    %v102 = vld [vmem:[%s2 + $0x108] sm:$0xf]
    %v103 = vld [vmem:[%s2 + $0x10c] sm:$0xf]
    %v104 = vld [vmem:[%s2 + $0x110] sm:$0xf]
    %v105 = vld [vmem:[%s2 + $0x114] sm:$0xf]
    %v106 = vld [vmem:[%s2 + $0x118] sm:$0xf]
    %v107 = vld [vmem:[%s2 + $0x11c] sm:$0xf]
    %v108 = vld [vmem:[%s2 + $0x120] sm:$0xf]
    %v109 = vld [vmem:[%s2 + $0x124] sm:$0xf]
    %v110 = vld [vmem:[%s2 + $0x128] sm:$0xf]
    %v111 = vld [vmem:[%s2 + $0x12c] sm:$0xf]
    %v112 = vld [vmem:[%s2 + $0x130] sm:$0xf]
    %v113 = vld [vmem:[%s2 + $0x134] sm:$0xf]
    %v114 = vld [vmem:[%s2 + $0x138] sm:$0xf]
    %v115 = vld [vmem:[%s2 + $0x13c] sm:$0xf]
    %v116 = vld [vmem:[%s2 + $0x140] sm:$0xf]
    %v117 = vld [vmem:[%s2 + $0x144] sm:$0xf]
    %v118 = vld [vmem:[%s2 + $0x148] sm:$0xf]
    %v119 = vld [vmem:[%s2 + $0x14c] sm:$0xf]
    %v120 = vld [vmem:[%s2 + $0x150] sm:$0xf]
    %v121 = vld [vmem:[%s2 + $0x154] sm:$0xf]
    %v122 = vld [vmem:[%s2 + $0x158] sm:$0xf]
    %v123 = vld [vmem:[%s2 + $0x15c] sm:$0xf]
    %v124 = vld [vmem:[%s2 + $0x160] sm:$0xf]
    %v125 = vld [vmem:[%s2 + $0x164] sm:$0xf]
    %v126 = vld [vmem:[%s2 + $0x168] sm:$0xf]
    %v127 = vld [vmem:[%s2 + $0x16c] sm:$0xf]
    %v128 = vld [vmem:[%s2 + $0x170] sm:$0xf]
    %v129 = vld [vmem:[%s2 + $0x174] sm:$0xf]
    %v130 = vld [vmem:[%s2 + $0x178] sm:$0xf]
    %v131 = vld [vmem:[%s2 + $0x17c] sm:$0xf]
    %v138 = vunpack.c.l.b16 %v30
    %v139 = vunpack.c.h.b16 %v30
    %v140 = vunpack.c.l.b16 %v31
    %v141 = vunpack.c.h.b16 %v31
    %v142 = vunpack.c.l.b16 %v32
    %v143 = vunpack.c.h.b16 %v32
    %v144 = vunpack.c.l.b16 %v33
    %v145 = vunpack.c.h.b16 %v33
    %v146 = vunpack.c.l.b16 %v34
    %v147 = vunpack.c.h.b16 %v34
    %v148 = vunpack.c.l.b16 %v35
    %v149 = vunpack.c.h.b16 %v35
    %v150 = vpack.c.b16 %v144, %v138
    %v151 = vpack.c.b16 %v145, %v139
    %v152 = vpack.c.b16 %v146, %v140
    %v153 = vpack.c.b16 %v147, %v141
    %v154 = vpack.c.b16 %v148, %v142
    %v155 = vpack.c.b16 %v149, %v143
    %v258 = vunpack.c.l.b16 %v36
    %v259 = vunpack.c.l.b16 %v37
    %v260 = vunpack.c.l.b16 %v38
    %v261 = vunpack.c.l.b16 %v39
    %v262 = vunpack.c.l.b16 %v40
    %v263 = vunpack.c.l.b16 %v41
    %v264 = vunpack.c.l.b16 %v42
    %v265 = vunpack.c.l.b16 %v43
    %v266 = vunpack.c.l.b16 %v44
    %v267 = vunpack.c.l.b16 %v45
    %v268 = vunpack.c.l.b16 %v46
    %v269 = vunpack.c.l.b16 %v47
    %v270 = vunpack.c.l.b16 %v48
    %v271 = vunpack.c.l.b16 %v49
    %v272 = vunpack.c.l.b16 %v50
    %v273 = vunpack.c.l.b16 %v51
    %v274 = vunpack.c.l.b16 %v52
    %v275 = vunpack.c.l.b16 %v53
    %v276 = vunpack.c.l.b16 %v54
    %v277 = vunpack.c.l.b16 %v55
    %v278 = vunpack.c.l.b16 %v56
    %v279 = vunpack.c.l.b16 %v57
    %v280 = vunpack.c.l.b16 %v58
    %v281 = vunpack.c.l.b16 %v59
    %v282 = vunpack.c.l.b16 %v60
    %v283 = vunpack.c.l.b16 %v61
    %v284 = vunpack.c.l.b16 %v62
    %v285 = vunpack.c.l.b16 %v63
    %v286 = vunpack.c.l.b16 %v64
    %v287 = vunpack.c.l.b16 %v65
    %v288 = vunpack.c.l.b16 %v66
    %v289 = vunpack.c.l.b16 %v67
    %v290 = vunpack.c.l.b16 %v68
    %v291 = vunpack.c.l.b16 %v69
    %v292 = vunpack.c.l.b16 %v70
    %v293 = vunpack.c.l.b16 %v71
    %v294 = vunpack.c.l.b16 %v72
    %v295 = vunpack.c.l.b16 %v73
    %v296 = vunpack.c.l.b16 %v74
    %v297 = vunpack.c.l.b16 %v75
    %v298 = vunpack.c.l.b16 %v76
    %v299 = vunpack.c.l.b16 %v77
    %v300 = vunpack.c.l.b16 %v78
    %v301 = vunpack.c.l.b16 %v79
    %v302 = vunpack.c.l.b16 %v80
    %v303 = vunpack.c.l.b16 %v81
    %v304 = vunpack.c.l.b16 %v82
    %v305 = vunpack.c.l.b16 %v83
    %v306 = vunpack.c.l.b16 %v84
    %v307 = vunpack.c.l.b16 %v85
    %v308 = vunpack.c.l.b16 %v86
    %v309 = vunpack.c.l.b16 %v87
    %v310 = vunpack.c.l.b16 %v88
    %v311 = vunpack.c.l.b16 %v89
    %v312 = vunpack.c.l.b16 %v90
    %v313 = vunpack.c.l.b16 %v91
    %v314 = vunpack.c.l.b16 %v92
    %v315 = vunpack.c.l.b16 %v93
    %v316 = vunpack.c.l.b16 %v94
    %v317 = vunpack.c.l.b16 %v95
    %v318 = vunpack.c.l.b16 %v96
    %v319 = vunpack.c.l.b16 %v97
    %v320 = vunpack.c.l.b16 %v98
    %v321 = vunpack.c.l.b16 %v99
    %v322 = vunpack.c.l.b16 %v100
    %v323 = vunpack.c.l.b16 %v101
    %v324 = vunpack.c.l.b16 %v102
    %v325 = vunpack.c.l.b16 %v103
    %v326 = vunpack.c.l.b16 %v104
    %v327 = vunpack.c.l.b16 %v105
    %v328 = vunpack.c.l.b16 %v106
    %v329 = vunpack.c.l.b16 %v107
    %v330 = vunpack.c.l.b16 %v108
    %v331 = vunpack.c.l.b16 %v109
    %v332 = vunpack.c.l.b16 %v110
    %v333 = vunpack.c.l.b16 %v111
    %v334 = vunpack.c.l.b16 %v112
    %v335 = vunpack.c.l.b16 %v113
    %v336 = vunpack.c.l.b16 %v114
    %v337 = vunpack.c.l.b16 %v115
    %v338 = vunpack.c.l.b16 %v116
    %v339 = vunpack.c.l.b16 %v117
    %v340 = vunpack.c.l.b16 %v118
    %v341 = vunpack.c.l.b16 %v119
    %v342 = vunpack.c.l.b16 %v120
    %v343 = vunpack.c.l.b16 %v121
    %v344 = vunpack.c.l.b16 %v122
    %v345 = vunpack.c.l.b16 %v123
    %v346 = vunpack.c.l.b16 %v124
    %v347 = vunpack.c.l.b16 %v125
    %v348 = vunpack.c.l.b16 %v126
    %v349 = vunpack.c.l.b16 %v127
    %v350 = vunpack.c.l.b16 %v128
    %v351 = vunpack.c.l.b16 %v129
    %v352 = vunpack.c.l.b16 %v130
    %v353 = vunpack.c.l.b16 %v131
    %v354 = vpack.c.b16 %v259, %v258
    %v355 = vpack.c.b16 %v261, %v260
    %v356 = vpack.c.b16 %v263, %v262
    %v357 = vpack.c.b16 %v265, %v264
    %v358 = vpack.c.b16 %v267, %v266
    %v359 = vpack.c.b16 %v269, %v268
    %v360 = vpack.c.b16 %v271, %v270
    %v361 = vpack.c.b16 %v273, %v272
    %v362 = vpack.c.b16 %v275, %v274
    %v363 = vpack.c.b16 %v277, %v276
    %v364 = vpack.c.b16 %v279, %v278
    %v365 = vpack.c.b16 %v281, %v280
    %v366 = vpack.c.b16 %v283, %v282
    %v367 = vpack.c.b16 %v285, %v284
    %v368 = vpack.c.b16 %v287, %v286
    %v369 = vpack.c.b16 %v289, %v288
    %v370 = vpack.c.b16 %v291, %v290
    %v371 = vpack.c.b16 %v293, %v292
    %v372 = vpack.c.b16 %v295, %v294
    %v373 = vpack.c.b16 %v297, %v296
    %v374 = vpack.c.b16 %v299, %v298
    %v375 = vpack.c.b16 %v301, %v300
    %v376 = vpack.c.b16 %v303, %v302
    %v377 = vpack.c.b16 %v305, %v304
    %v378 = vpack.c.b16 %v307, %v306
    %v379 = vpack.c.b16 %v309, %v308
    %v380 = vpack.c.b16 %v311, %v310
    %v381 = vpack.c.b16 %v313, %v312
    %v382 = vpack.c.b16 %v315, %v314
    %v383 = vpack.c.b16 %v317, %v316
    %v384 = vpack.c.b16 %v319, %v318
    %v385 = vpack.c.b16 %v321, %v320
    %v386 = vpack.c.b16 %v323, %v322
    %v387 = vpack.c.b16 %v325, %v324
    %v388 = vpack.c.b16 %v327, %v326
    %v389 = vpack.c.b16 %v329, %v328
    %v390 = vpack.c.b16 %v331, %v330
    %v391 = vpack.c.b16 %v333, %v332
    %v392 = vpack.c.b16 %v335, %v334
    %v393 = vpack.c.b16 %v337, %v336
    %v394 = vpack.c.b16 %v339, %v338
    %v395 = vpack.c.b16 %v341, %v340
    %v396 = vpack.c.b16 %v343, %v342
    %v397 = vpack.c.b16 %v345, %v344
    %v398 = vpack.c.b16 %v347, %v346
    %v399 = vpack.c.b16 %v349, %v348
    %v400 = vpack.c.b16 %v351, %v350
    %v401 = vpack.c.b16 %v353, %v352
    %450 = vmatpush.bf16.msra.mxu0 %v361
    %451 = vmatpush.bf16.msra.mxu0 %v360
    %452 = vmatpush.bf16.msra.mxu0 %v359
    %453 = vmatpush.bf16.msra.mxu0 %v358
    %454 = vmatpush.bf16.msra.mxu0 %v357
    %455 = vmatpush.bf16.msra.mxu0 %v356
    %456 = vmatpush.bf16.msra.mxu0 %v355
    %457 = vmatpush.bf16.msra.mxu0 %v354
    %458 = vmatmul.bf16.gmra.mxu0 %v150
    %v459 = vpop.f32.mrf.mxu0
    %v460 = vadd.f32 0.0, %v459
    %v461 = vpop.f32.mrf.mxu0
    %v462 = vadd.f32 0.0, %v461
    %463 = vdwg.mxu0
    %464 = vmatpush.bf16.msra.mxu0 %v369
    %465 = vmatpush.bf16.msra.mxu0 %v368
    %466 = vmatpush.bf16.msra.mxu0 %v367
    %467 = vmatpush.bf16.msra.mxu0 %v366
    %468 = vmatpush.bf16.msra.mxu0 %v365
    %469 = vmatpush.bf16.msra.mxu0 %v364
    %470 = vmatpush.bf16.msra.mxu0 %v363
    %471 = vmatpush.bf16.msra.mxu0 %v362
    %472 = vmatmul.bf16.gmra.mxu0 %v151
    %v473 = vpop.f32.mrf.mxu0
    %v474 = vadd.f32 %v460, %v473
    %v475 = vpop.f32.mrf.mxu0
    %v476 = vadd.f32 %v462, %v475
    %477 = vdwg.mxu0
    %478 = vmatpush.bf16.msra.mxu0 %v377
    %479 = vmatpush.bf16.msra.mxu0 %v376
    %480 = vmatpush.bf16.msra.mxu0 %v375
    %481 = vmatpush.bf16.msra.mxu0 %v374
    %482 = vmatpush.bf16.msra.mxu0 %v373
    %483 = vmatpush.bf16.msra.mxu0 %v372
    %484 = vmatpush.bf16.msra.mxu0 %v371
    %485 = vmatpush.bf16.msra.mxu0 %v370
    %486 = vmatmul.bf16.gmra.mxu0 %v152
    %v487 = vpop.f32.mrf.mxu0
    %v488 = vadd.f32 %v474, %v487
    %v489 = vpop.f32.mrf.mxu0
    %v490 = vadd.f32 %v476, %v489
    %491 = vdwg.mxu0
    %492 = vmatpush.bf16.msra.mxu0 %v385
    %493 = vmatpush.bf16.msra.mxu0 %v384
    %494 = vmatpush.bf16.msra.mxu0 %v383
    %495 = vmatpush.bf16.msra.mxu0 %v382
    %496 = vmatpush.bf16.msra.mxu0 %v381
    %497 = vmatpush.bf16.msra.mxu0 %v380
    %498 = vmatpush.bf16.msra.mxu0 %v379
    %499 = vmatpush.bf16.msra.mxu0 %v378
    %500 = vmatmul.bf16.gmra.mxu0 %v153
    %v501 = vpop.f32.mrf.mxu0
    %v502 = vadd.f32 %v488, %v501
    %v503 = vpop.f32.mrf.mxu0
    %v504 = vadd.f32 %v490, %v503
    %505 = vdwg.mxu0
    %506 = vmatpush.bf16.msra.mxu0 %v393
    %507 = vmatpush.bf16.msra.mxu0 %v392
    %508 = vmatpush.bf16.msra.mxu0 %v391
    %509 = vmatpush.bf16.msra.mxu0 %v390
    %510 = vmatpush.bf16.msra.mxu0 %v389
    %511 = vmatpush.bf16.msra.mxu0 %v388
    %512 = vmatpush.bf16.msra.mxu0 %v387
    %513 = vmatpush.bf16.msra.mxu0 %v386
    %514 = vmatmul.bf16.gmra.mxu0 %v154
    %v515 = vpop.f32.mrf.mxu0
    %v516 = vadd.f32 %v502, %v515
    %v517 = vpop.f32.mrf.mxu0
    %v518 = vadd.f32 %v504, %v517
    %519 = vdwg.mxu0
    %520 = vmatpush.bf16.msra.mxu0 %v401
    %521 = vmatpush.bf16.msra.mxu0 %v400
    %522 = vmatpush.bf16.msra.mxu0 %v399
    %523 = vmatpush.bf16.msra.mxu0 %v398
    %524 = vmatpush.bf16.msra.mxu0 %v397
    %525 = vmatpush.bf16.msra.mxu0 %v396
    %526 = vmatpush.bf16.msra.mxu0 %v395
    %527 = vmatpush.bf16.msra.mxu0 %v394
    %528 = vmatmul.bf16.gmra.mxu0 %v155
    %v529 = vpop.f32.mrf.mxu0
    %v530 = vadd.f32 %v516, %v529
    %v531 = vpop.f32.mrf.mxu0
    %v532 = vadd.f32 %v518, %v531
    %533 = vdwg.mxu0
    %v534 = vld [vmem:[%s1] sm:$0xff]
    %v535 = vld [vmem:[%s1 + $0x8] sm:$0x7]
    %v536 = vld [vmem:[%s3] sm:$0xf]
    %v537 = vld [vmem:[%s3 + $0x4] sm:$0xf]
    %v538 = vld [vmem:[%s3 + $0x8] sm:$0xf]
    %v539 = vld [vmem:[%s3 + $0xc] sm:$0xf]
    %v540 = vld [vmem:[%s3 + $0x10] sm:$0xf]
    %v541 = vld [vmem:[%s3 + $0x14] sm:$0xf]
    %v542 = vld [vmem:[%s3 + $0x18] sm:$0xf]
    %v543 = vld [vmem:[%s3 + $0x1c] sm:$0xf]
    %v544 = vld [vmem:[%s3 + $0x20] sm:$0xf]
    %v545 = vld [vmem:[%s3 + $0x24] sm:$0xf]
    %v546 = vld [vmem:[%s3 + $0x28] sm:$0xf]
    %v547 = vld [vmem:[%s3 + $0x2c] sm:$0xf]
    %v548 = vld [vmem:[%s3 + $0x30] sm:$0xf]
    %v549 = vld [vmem:[%s3 + $0x34] sm:$0xf]
    %v550 = vld [vmem:[%s3 + $0x38] sm:$0xf]
    %v551 = vld [vmem:[%s3 + $0x3c] sm:$0xf]
    %v552 = vld [vmem:[%s3 + $0x40] sm:$0xf]
    %v553 = vld [vmem:[%s3 + $0x44] sm:$0xf]
    %v554 = vld [vmem:[%s3 + $0x48] sm:$0xf]
    %v555 = vld [vmem:[%s3 + $0x4c] sm:$0xf]
    %v556 = vld [vmem:[%s3 + $0x50] sm:$0xf]
    %v557 = vld [vmem:[%s3 + $0x54] sm:$0xf]
    %v558 = vld [vmem:[%s3 + $0x58] sm:$0xf]
    %v559 = vld [vmem:[%s3 + $0x5c] sm:$0xf]
    %v560 = vld [vmem:[%s3 + $0x60] sm:$0xf]
    %v561 = vld [vmem:[%s3 + $0x64] sm:$0xf]
    %v562 = vld [vmem:[%s3 + $0x68] sm:$0xf]
    %v563 = vld [vmem:[%s3 + $0x6c] sm:$0xf]
    %v564 = vld [vmem:[%s3 + $0x70] sm:$0xf]
    %v565 = vld [vmem:[%s3 + $0x74] sm:$0xf]
    %v566 = vld [vmem:[%s3 + $0x78] sm:$0xf]
    %v567 = vld [vmem:[%s3 + $0x7c] sm:$0xf]
    %v568 = vld [vmem:[%s3 + $0x80] sm:$0xf]
    %v569 = vld [vmem:[%s3 + $0x84] sm:$0xf]
    %v570 = vld [vmem:[%s3 + $0x88] sm:$0xf]
    %v571 = vld [vmem:[%s3 + $0x8c] sm:$0xf]
    %v572 = vld [vmem:[%s3 + $0x90] sm:$0xf]
    %v573 = vld [vmem:[%s3 + $0x94] sm:$0xf]
    %v574 = vld [vmem:[%s3 + $0x98] sm:$0xf]
    %v575 = vld [vmem:[%s3 + $0x9c] sm:$0xf]
    %v576 = vld [vmem:[%s3 + $0xa0] sm:$0xf]
    %v577 = vld [vmem:[%s3 + $0xa4] sm:$0xf]
    %v578 = vld [vmem:[%s3 + $0xa8] sm:$0xf]
    %v579 = vld [vmem:[%s3 + $0xac] sm:$0xf]
    %v580 = vld [vmem:[%s3 + $0xb0] sm:$0xf]
    %v581 = vld [vmem:[%s3 + $0xb4] sm:$0xf]
    %v582 = vld [vmem:[%s3 + $0xb8] sm:$0xf]
    %v583 = vld [vmem:[%s3 + $0xbc] sm:$0xf]
    %v584 = vld [vmem:[%s3 + $0xc0] sm:$0xf]
    %v585 = vld [vmem:[%s3 + $0xc4] sm:$0xf]
    %v586 = vld [vmem:[%s3 + $0xc8] sm:$0xf]
    %v587 = vld [vmem:[%s3 + $0xcc] sm:$0xf]
    %v588 = vld [vmem:[%s3 + $0xd0] sm:$0xf]
    %v589 = vld [vmem:[%s3 + $0xd4] sm:$0xf]
    %v590 = vld [vmem:[%s3 + $0xd8] sm:$0xf]
    %v591 = vld [vmem:[%s3 + $0xdc] sm:$0xf]
    %v592 = vld [vmem:[%s3 + $0xe0] sm:$0xf]
    %v593 = vld [vmem:[%s3 + $0xe4] sm:$0xf]
    %v594 = vld [vmem:[%s3 + $0xe8] sm:$0xf]
    %v595 = vld [vmem:[%s3 + $0xec] sm:$0xf]
    %v596 = vld [vmem:[%s3 + $0xf0] sm:$0xf]
    %v597 = vld [vmem:[%s3 + $0xf4] sm:$0xf]
    %v598 = vld [vmem:[%s3 + $0xf8] sm:$0xf]
    %v599 = vld [vmem:[%s3 + $0xfc] sm:$0xf]
    %v600 = vld [vmem:[%s3 + $0x100] sm:$0xf]
    %v601 = vld [vmem:[%s3 + $0x104] sm:$0xf]
    %v602 = vld [vmem:[%s3 + $0x108] sm:$0xf]
    %v603 = vld [vmem:[%s3 + $0x10c] sm:$0xf]
    %v604 = vld [vmem:[%s3 + $0x110] sm:$0xf]
    %v605 = vld [vmem:[%s3 + $0x114] sm:$0xf]
    %v606 = vld [vmem:[%s3 + $0x118] sm:$0xf]
    %v607 = vld [vmem:[%s3 + $0x11c] sm:$0xf]
    %v608 = vld [vmem:[%s3 + $0x120] sm:$0xf]
    %v609 = vld [vmem:[%s3 + $0x124] sm:$0xf]
    %v610 = vld [vmem:[%s3 + $0x128] sm:$0xf]
    %v611 = vld [vmem:[%s3 + $0x12c] sm:$0xf]
    %v612 = vld [vmem:[%s3 + $0x130] sm:$0xf]
    %v613 = vld [vmem:[%s3 + $0x134] sm:$0xf]
    %v614 = vld [vmem:[%s3 + $0x138] sm:$0xf]
    %v615 = vld [vmem:[%s3 + $0x13c] sm:$0xf]
    %v616 = vld [vmem:[%s3 + $0x140] sm:$0xf]
    %v617 = vld [vmem:[%s3 + $0x144] sm:$0xf]
    %v618 = vld [vmem:[%s3 + $0x148] sm:$0xf]
    %v619 = vld [vmem:[%s3 + $0x14c] sm:$0xf]
    %v620 = vld [vmem:[%s3 + $0x150] sm:$0xf]
    %v621 = vld [vmem:[%s3 + $0x154] sm:$0xf]
    %v622 = vld [vmem:[%s3 + $0x158] sm:$0xf]
    %v623 = vld [vmem:[%s3 + $0x15c] sm:$0xf]
    %v624 = vld [vmem:[%s3 + $0x160] sm:$0xf]
    %v625 = vld [vmem:[%s3 + $0x164] sm:$0xf]
    %v626 = vld [vmem:[%s3 + $0x168] sm:$0xf]
    %v627 = vld [vmem:[%s3 + $0x16c] sm:$0xf]
    %v628 = vld [vmem:[%s3 + $0x170] sm:$0xf]
    %v629 = vld [vmem:[%s3 + $0x174] sm:$0xf]
    %v630 = vld [vmem:[%s3 + $0x178] sm:$0xf]
    %v631 = vld [vmem:[%s3 + $0x17c] sm:$0xf]
    %v632 = vld [vmem:[%s3 + $0x180] sm:$0xf]
    %v633 = vld [vmem:[%s3 + $0x184] sm:$0xf]
    %v634 = vld [vmem:[%s3 + $0x188] sm:$0xf]
    %v635 = vld [vmem:[%s3 + $0x18c] sm:$0xf]
    %v636 = vld [vmem:[%s3 + $0x190] sm:$0xf]
    %v637 = vld [vmem:[%s3 + $0x194] sm:$0xf]
    %v638 = vld [vmem:[%s3 + $0x198] sm:$0xf]
    %v639 = vld [vmem:[%s3 + $0x19c] sm:$0xf]
    %v640 = vld [vmem:[%s3 + $0x1a0] sm:$0xf]
    %v641 = vld [vmem:[%s3 + $0x1a4] sm:$0xf]
    %v642 = vld [vmem:[%s3 + $0x1a8] sm:$0xf]
    %v643 = vld [vmem:[%s3 + $0x1ac] sm:$0xf]
    %v644 = vld [vmem:[%s3 + $0x1b0] sm:$0xf]
    %v645 = vld [vmem:[%s3 + $0x1b4] sm:$0xf]
    %v646 = vld [vmem:[%s3 + $0x1b8] sm:$0xf]
    %v647 = vld [vmem:[%s3 + $0x1bc] sm:$0xf]
    %v648 = vld [vmem:[%s3 + $0x1c0] sm:$0xf]
    %v649 = vld [vmem:[%s3 + $0x1c4] sm:$0xf]
    %v650 = vld [vmem:[%s3 + $0x1c8] sm:$0xf]
    %v651 = vld [vmem:[%s3 + $0x1cc] sm:$0xf]
    %v652 = vld [vmem:[%s3 + $0x1d0] sm:$0xf]
    %v653 = vld [vmem:[%s3 + $0x1d4] sm:$0xf]
    %v654 = vld [vmem:[%s3 + $0x1d8] sm:$0xf]
    %v655 = vld [vmem:[%s3 + $0x1dc] sm:$0xf]
    %v656 = vld [vmem:[%s3 + $0x1e0] sm:$0xf]
    %v657 = vld [vmem:[%s3 + $0x1e4] sm:$0xf]
    %v658 = vld [vmem:[%s3 + $0x1e8] sm:$0xf]
    %v659 = vld [vmem:[%s3 + $0x1ec] sm:$0xf]
    %v660 = vld [vmem:[%s3 + $0x1f0] sm:$0xf]
    %v661 = vld [vmem:[%s3 + $0x1f4] sm:$0xf]
    %v662 = vld [vmem:[%s3 + $0x1f8] sm:$0xf]
    %v663 = vld [vmem:[%s3 + $0x1fc] sm:$0xf]
    %v664 = vld [vmem:[%s3 + $0x200] sm:$0xf]
    %v665 = vld [vmem:[%s3 + $0x204] sm:$0xf]
    %v666 = vld [vmem:[%s3 + $0x208] sm:$0xf]
    %v667 = vld [vmem:[%s3 + $0x20c] sm:$0xf]
    %v668 = vld [vmem:[%s3 + $0x210] sm:$0xf]
    %v669 = vld [vmem:[%s3 + $0x214] sm:$0xf]
    %v670 = vld [vmem:[%s3 + $0x218] sm:$0xf]
    %v671 = vld [vmem:[%s3 + $0x21c] sm:$0xf]
    %v672 = vld [vmem:[%s3 + $0x220] sm:$0xf]
    %v673 = vld [vmem:[%s3 + $0x224] sm:$0xf]
    %v674 = vld [vmem:[%s3 + $0x228] sm:$0xf]
    %v675 = vld [vmem:[%s3 + $0x22c] sm:$0xf]
    %v676 = vld [vmem:[%s3 + $0x230] sm:$0xf]
    %v677 = vld [vmem:[%s3 + $0x234] sm:$0xf]
    %v678 = vld [vmem:[%s3 + $0x238] sm:$0xf]
    %v679 = vld [vmem:[%s3 + $0x23c] sm:$0xf]
    %v680 = vld [vmem:[%s3 + $0x240] sm:$0xf]
    %v681 = vld [vmem:[%s3 + $0x244] sm:$0xf]
    %v682 = vld [vmem:[%s3 + $0x248] sm:$0xf]
    %v683 = vld [vmem:[%s3 + $0x24c] sm:$0xf]
    %v684 = vld [vmem:[%s3 + $0x250] sm:$0xf]
    %v685 = vld [vmem:[%s3 + $0x254] sm:$0xf]
    %v686 = vld [vmem:[%s3 + $0x258] sm:$0xf]
    %v687 = vld [vmem:[%s3 + $0x25c] sm:$0xf]
    %v688 = vld [vmem:[%s3 + $0x260] sm:$0xf]
    %v689 = vld [vmem:[%s3 + $0x264] sm:$0xf]
    %v690 = vld [vmem:[%s3 + $0x268] sm:$0xf]
    %v691 = vld [vmem:[%s3 + $0x26c] sm:$0xf]
    %v692 = vld [vmem:[%s3 + $0x270] sm:$0xf]
    %v693 = vld [vmem:[%s3 + $0x274] sm:$0xf]
    %v694 = vld [vmem:[%s3 + $0x278] sm:$0xf]
    %v695 = vld [vmem:[%s3 + $0x27c] sm:$0xf]
    %v696 = vld [vmem:[%s3 + $0x280] sm:$0xf]
    %698 = vst [vmem:[#allocation1] ss:$9 sm:$0xff] %v534
    %v699 = vld [vmem:[#allocation1] sm:$0xff]
    %v700 = vld [vmem:[#allocation1 + $0x9] sm:$0xff]
    %v701 = vld [vmem:[#allocation1 + $0x12] sm:$0xff]
    %v702 = vld [vmem:[#allocation1 + $0x1b] sm:$0xff]
    %v703 = vld [vmem:[#allocation1 + $0x24] sm:$0xff]
    %v704 = vld [vmem:[#allocation1 + $0x2d] sm:$0xff]
    %v705 = vld [vmem:[#allocation1 + $0x36] sm:$0xff]
    %v706 = vld [vmem:[#allocation1 + $0x3f] sm:$0xff]
    %708 = vst [vmem:[#allocation1] ss:$9 sm:$0xff] %v535
    %v709 = vld [vmem:[#allocation1] sm:$0xff]
    %v710 = vld [vmem:[#allocation1 + $0x9] sm:$0xff]
    %v711 = vld [vmem:[#allocation1 + $0x12] sm:$0xff]
    %v883 = vunpack.c.l.b16 %v536
    %v884 = vunpack.c.l.b16 %v537
    %v885 = vunpack.c.l.b16 %v538
    %v886 = vunpack.c.l.b16 %v539
    %v887 = vunpack.c.l.b16 %v540
    %v888 = vunpack.c.l.b16 %v541
    %v889 = vunpack.c.l.b16 %v542
    %v890 = vunpack.c.l.b16 %v543
    %v891 = vunpack.c.l.b16 %v544
    %v892 = vunpack.c.l.b16 %v545
    %v893 = vunpack.c.l.b16 %v546
    %v894 = vunpack.c.l.b16 %v547
    %v895 = vunpack.c.l.b16 %v548
    %v896 = vunpack.c.l.b16 %v549
    %v897 = vunpack.c.l.b16 %v550
    %v898 = vunpack.c.l.b16 %v551
    %v899 = vunpack.c.l.b16 %v552
    %v900 = vunpack.c.l.b16 %v553
    %v901 = vunpack.c.l.b16 %v554
    %v902 = vunpack.c.l.b16 %v555
    %v903 = vunpack.c.l.b16 %v556
    %v904 = vunpack.c.l.b16 %v557
    %v905 = vunpack.c.l.b16 %v558
    %v906 = vunpack.c.l.b16 %v559
    %v907 = vunpack.c.l.b16 %v560
    %v908 = vunpack.c.l.b16 %v561
    %v909 = vunpack.c.l.b16 %v562
    %v910 = vunpack.c.l.b16 %v563
    %v911 = vunpack.c.l.b16 %v564
    %v912 = vunpack.c.l.b16 %v565
    %v913 = vunpack.c.l.b16 %v566
    %v914 = vunpack.c.l.b16 %v567
    %v915 = vunpack.c.l.b16 %v568
    %v916 = vunpack.c.l.b16 %v569
    %v917 = vunpack.c.l.b16 %v570
    %v918 = vunpack.c.l.b16 %v571
    %v919 = vunpack.c.l.b16 %v572
    %v920 = vunpack.c.l.b16 %v573
    %v921 = vunpack.c.l.b16 %v574
    %v922 = vunpack.c.l.b16 %v575
    %v923 = vunpack.c.l.b16 %v576
    %v924 = vunpack.c.l.b16 %v577
    %v925 = vunpack.c.l.b16 %v578
    %v926 = vunpack.c.l.b16 %v579
    %v927 = vunpack.c.l.b16 %v580
    %v928 = vunpack.c.l.b16 %v581
    %v929 = vunpack.c.l.b16 %v582
    %v930 = vunpack.c.l.b16 %v583
    %v931 = vunpack.c.l.b16 %v584
    %v932 = vunpack.c.l.b16 %v585
    %v933 = vunpack.c.l.b16 %v586
    %v934 = vunpack.c.l.b16 %v587
    %v935 = vunpack.c.l.b16 %v588
    %v936 = vunpack.c.l.b16 %v589
    %v937 = vunpack.c.l.b16 %v590
    %v938 = vunpack.c.l.b16 %v591
    %v939 = vunpack.c.l.b16 %v592
    %v940 = vunpack.c.l.b16 %v593
    %v941 = vunpack.c.l.b16 %v594
    %v942 = vunpack.c.l.b16 %v595
    %v943 = vunpack.c.l.b16 %v596
    %v944 = vunpack.c.l.b16 %v597
    %v945 = vunpack.c.l.b16 %v598
    %v946 = vunpack.c.l.b16 %v599
    %v947 = vunpack.c.l.b16 %v600
    %v948 = vunpack.c.l.b16 %v601
    %v949 = vunpack.c.l.b16 %v602
    %v950 = vunpack.c.l.b16 %v603
    %v951 = vunpack.c.l.b16 %v604
    %v952 = vunpack.c.l.b16 %v605
    %v953 = vunpack.c.l.b16 %v606
    %v954 = vunpack.c.l.b16 %v607
    %v955 = vunpack.c.l.b16 %v608
    %v956 = vunpack.c.l.b16 %v609
    %v957 = vunpack.c.l.b16 %v610
    %v958 = vunpack.c.l.b16 %v611
    %v959 = vunpack.c.l.b16 %v612
    %v960 = vunpack.c.l.b16 %v613
    %v961 = vunpack.c.l.b16 %v614
    %v962 = vunpack.c.l.b16 %v615
    %v963 = vunpack.c.l.b16 %v616
    %v964 = vunpack.c.l.b16 %v617
    %v965 = vunpack.c.l.b16 %v618
    %v966 = vunpack.c.l.b16 %v619
    %v967 = vunpack.c.l.b16 %v620
    %v968 = vunpack.c.l.b16 %v621
    %v969 = vunpack.c.l.b16 %v622
    %v970 = vunpack.c.l.b16 %v623
    %v971 = vunpack.c.l.b16 %v624
    %v972 = vunpack.c.l.b16 %v625
    %v973 = vunpack.c.l.b16 %v626
    %v974 = vunpack.c.l.b16 %v627
    %v975 = vunpack.c.l.b16 %v628
    %v976 = vunpack.c.l.b16 %v629
    %v977 = vunpack.c.l.b16 %v630
    %v978 = vunpack.c.l.b16 %v631
    %v979 = vunpack.c.l.b16 %v632
    %v980 = vunpack.c.l.b16 %v633
    %v981 = vunpack.c.l.b16 %v634
    %v982 = vunpack.c.l.b16 %v635
    %v983 = vunpack.c.l.b16 %v636
    %v984 = vunpack.c.l.b16 %v637
    %v985 = vunpack.c.l.b16 %v638
    %v986 = vunpack.c.l.b16 %v639
    %v987 = vunpack.c.l.b16 %v640
    %v988 = vunpack.c.l.b16 %v641
    %v989 = vunpack.c.l.b16 %v642
    %v990 = vunpack.c.l.b16 %v643
    %v991 = vunpack.c.l.b16 %v644
    %v992 = vunpack.c.l.b16 %v645
    %v993 = vunpack.c.l.b16 %v646
    %v994 = vunpack.c.l.b16 %v647
    %v995 = vunpack.c.l.b16 %v648
    %v996 = vunpack.c.l.b16 %v649
    %v997 = vunpack.c.l.b16 %v650
    %v998 = vunpack.c.l.b16 %v651
    %v999 = vunpack.c.l.b16 %v652
    %v1000 = vunpack.c.l.b16 %v653
    %v1001 = vunpack.c.l.b16 %v654
    %v1002 = vunpack.c.l.b16 %v655
    %v1003 = vunpack.c.l.b16 %v656
    %v1004 = vunpack.c.l.b16 %v657
    %v1005 = vunpack.c.l.b16 %v658
    %v1006 = vunpack.c.l.b16 %v659
    %v1007 = vunpack.c.l.b16 %v660
    %v1008 = vunpack.c.l.b16 %v661
    %v1009 = vunpack.c.l.b16 %v662
    %v1010 = vunpack.c.l.b16 %v663
    %v1011 = vunpack.c.l.b16 %v664
    %v1012 = vunpack.c.l.b16 %v665
    %v1013 = vunpack.c.l.b16 %v666
    %v1014 = vunpack.c.l.b16 %v667
    %v1015 = vunpack.c.l.b16 %v668
    %v1016 = vunpack.c.l.b16 %v669
    %v1017 = vunpack.c.l.b16 %v670
    %v1018 = vunpack.c.l.b16 %v671
    %v1019 = vunpack.c.l.b16 %v672
    %v1020 = vunpack.c.l.b16 %v673
    %v1021 = vunpack.c.l.b16 %v674
    %v1022 = vunpack.c.l.b16 %v675
    %v1023 = vunpack.c.l.b16 %v676
    %v1024 = vunpack.c.l.b16 %v677
    %v1025 = vunpack.c.l.b16 %v678
    %v1026 = vunpack.c.l.b16 %v679
    %v1027 = vunpack.c.l.b16 %v680
    %v1028 = vunpack.c.l.b16 %v681
    %v1029 = vunpack.c.l.b16 %v682
    %v1030 = vunpack.c.l.b16 %v683
    %v1031 = vunpack.c.l.b16 %v684
    %v1032 = vunpack.c.l.b16 %v685
    %v1033 = vunpack.c.l.b16 %v686
    %v1034 = vunpack.c.l.b16 %v687
    %v1035 = vunpack.c.l.b16 %v688
    %v1036 = vunpack.c.l.b16 %v689
    %v1037 = vunpack.c.l.b16 %v690
    %v1038 = vunpack.c.l.b16 %v691
    %v1039 = vunpack.c.l.b16 %v692
    %v1040 = vunpack.c.l.b16 %v693
    %v1041 = vunpack.c.l.b16 %v694
    %v1042 = vunpack.c.l.b16 %v695
    %v1043 = vunpack.c.l.b16 %v696
    %v1044 = vpack.c.b16 %v884, %v883
    %v1045 = vpack.c.b16 %v886, %v885
    %v1046 = vpack.c.b16 %v888, %v887
    %v1047 = vpack.c.b16 %v890, %v889
    %v1048 = vpack.c.b16 %v892, %v891
    %v1049 = vpack.c.b16 %v894, %v893
    %v1050 = vpack.c.b16 %v896, %v895
    %v1051 = vpack.c.b16 %v898, %v897
    %v1052 = vpack.c.b16 %v900, %v899
    %v1053 = vpack.c.b16 %v902, %v901
    %v1054 = vpack.c.b16 %v904, %v903
    %v1055 = vpack.c.b16 %v906, %v905
    %v1056 = vpack.c.b16 %v908, %v907
    %v1057 = vpack.c.b16 %v910, %v909
    %v1058 = vpack.c.b16 %v912, %v911
    %v1059 = vpack.c.b16 %v914, %v913
    %v1060 = vpack.c.b16 %v916, %v915
    %v1061 = vpack.c.b16 %v918, %v917
    %v1062 = vpack.c.b16 %v920, %v919
    %v1063 = vpack.c.b16 %v922, %v921
    %v1064 = vpack.c.b16 %v924, %v923
    %v1065 = vpack.c.b16 %v926, %v925
    %v1066 = vpack.c.b16 %v928, %v927
    %v1067 = vpack.c.b16 %v930, %v929
    %v1068 = vpack.c.b16 %v932, %v931
    %v1069 = vpack.c.b16 %v934, %v933
    %v1070 = vpack.c.b16 %v936, %v935
    %v1071 = vpack.c.b16 %v938, %v937
    %v1072 = vpack.c.b16 %v940, %v939
    %v1073 = vpack.c.b16 %v942, %v941
    %v1074 = vpack.c.b16 %v944, %v943
    %v1075 = vpack.c.b16 %v946, %v945
    %v1076 = vpack.c.b16 %v948, %v947
    %v1077 = vpack.c.b16 %v950, %v949
    %v1078 = vpack.c.b16 %v952, %v951
    %v1079 = vpack.c.b16 %v954, %v953
    %v1080 = vpack.c.b16 %v956, %v955
    %v1081 = vpack.c.b16 %v958, %v957
    %v1082 = vpack.c.b16 %v960, %v959
    %v1083 = vpack.c.b16 %v962, %v961
    %v1084 = vpack.c.b16 %v964, %v963
    %v1085 = vpack.c.b16 %v966, %v965
    %v1086 = vpack.c.b16 %v968, %v967
    %v1087 = vpack.c.b16 %v970, %v969
    %v1088 = vpack.c.b16 %v972, %v971
    %v1089 = vpack.c.b16 %v974, %v973
    %v1090 = vpack.c.b16 %v976, %v975
    %v1091 = vpack.c.b16 %v978, %v977
    %v1092 = vpack.c.b16 %v980, %v979
    %v1093 = vpack.c.b16 %v982, %v981
    %v1094 = vpack.c.b16 %v984, %v983
    %v1095 = vpack.c.b16 %v986, %v985
    %v1096 = vpack.c.b16 %v988, %v987
    %v1097 = vpack.c.b16 %v990, %v989
    %v1098 = vpack.c.b16 %v992, %v991
    %v1099 = vpack.c.b16 %v994, %v993
    %v1100 = vpack.c.b16 %v996, %v995
    %v1101 = vpack.c.b16 %v998, %v997
    %v1102 = vpack.c.b16 %v1000, %v999
    %v1103 = vpack.c.b16 %v1002, %v1001
    %v1104 = vpack.c.b16 %v1004, %v1003
    %v1105 = vpack.c.b16 %v1006, %v1005
    %v1106 = vpack.c.b16 %v1008, %v1007
    %v1107 = vpack.c.b16 %v1010, %v1009
    %v1108 = vpack.c.b16 %v1012, %v1011
    %v1109 = vpack.c.b16 %v1014, %v1013
    %v1110 = vpack.c.b16 %v1016, %v1015
    %v1111 = vpack.c.b16 %v1018, %v1017
    %v1112 = vpack.c.b16 %v1020, %v1019
    %v1113 = vpack.c.b16 %v1022, %v1021
    %v1114 = vpack.c.b16 %v1024, %v1023
    %v1115 = vpack.c.b16 %v1026, %v1025
    %v1116 = vpack.c.b16 %v1028, %v1027
    %v1117 = vpack.c.b16 %v1030, %v1029
    %v1118 = vpack.c.b16 %v1032, %v1031
    %v1119 = vpack.c.b16 %v1034, %v1033
    %v1120 = vpack.c.b16 %v1036, %v1035
    %v1121 = vpack.c.b16 %v1038, %v1037
    %v1122 = vpack.c.b16 %v1040, %v1039
    %v1123 = vpack.c.b16 %v1042, %v1041
    %v1124 = vpack.c.b16 %v1043, %v1043
    %vm1205 = vcmask 64512
    %v1206 = vsel %vm1205, %v711, 0
    %vm1208 = vcmask 1043456
    %v1210 = vsel %vm1208, %v1124, 0
    %1212 = vmatpush.bf16.msra.mxu0 %v1051
    %1213 = vmatpush.bf16.msra.mxu0 %v1050
    %1214 = vmatpush.bf16.msra.mxu0 %v1049
    %1215 = vmatpush.bf16.msra.mxu0 %v1048
    %1216 = vmatpush.bf16.msra.mxu0 %v1047
    %1217 = vmatpush.bf16.msra.mxu0 %v1046
    %1218 = vmatpush.bf16.msra.mxu0 %v1045
    %1219 = vmatpush.bf16.msra.mxu0 %v1044
    %1220 = vmatmul.bf16.gmra.mxu0 %v699
    %v1221 = vpop.f32.mrf.mxu0
    %v1222 = vadd.f32 0.0, %v1221
    %v1223 = vpop.f32.mrf.mxu0
    %1224 = vdwg.mxu0
    %1225 = vmatpush.bf16.msra.mxu0 %v1059
    %1226 = vmatpush.bf16.msra.mxu0 %v1058
    %1227 = vmatpush.bf16.msra.mxu0 %v1057
    %1228 = vmatpush.bf16.msra.mxu0 %v1056
    %1229 = vmatpush.bf16.msra.mxu0 %v1055
    %1230 = vmatpush.bf16.msra.mxu0 %v1054
    %1231 = vmatpush.bf16.msra.mxu0 %v1053
    %1232 = vmatpush.bf16.msra.mxu0 %v1052
    %1233 = vmatmul.bf16.gmra.mxu0 %v700
    %v1234 = vpop.f32.mrf.mxu0
    %v1235 = vadd.f32 %v1222, %v1234
    %v1236 = vpop.f32.mrf.mxu0
    %1237 = vdwg.mxu0
    %1238 = vmatpush.bf16.msra.mxu0 %v1067
    %1239 = vmatpush.bf16.msra.mxu0 %v1066
    %1240 = vmatpush.bf16.msra.mxu0 %v1065
    %1241 = vmatpush.bf16.msra.mxu0 %v1064
    %1242 = vmatpush.bf16.msra.mxu0 %v1063
    %1243 = vmatpush.bf16.msra.mxu0 %v1062
    %1244 = vmatpush.bf16.msra.mxu0 %v1061
    %1245 = vmatpush.bf16.msra.mxu0 %v1060
    %1246 = vmatmul.bf16.gmra.mxu0 %v701
    %v1247 = vpop.f32.mrf.mxu0
    %v1248 = vadd.f32 %v1235, %v1247
    %v1249 = vpop.f32.mrf.mxu0
    %1250 = vdwg.mxu0
    %1251 = vmatpush.bf16.msra.mxu0 %v1075
    %1252 = vmatpush.bf16.msra.mxu0 %v1074
    %1253 = vmatpush.bf16.msra.mxu0 %v1073
    %1254 = vmatpush.bf16.msra.mxu0 %v1072
    %1255 = vmatpush.bf16.msra.mxu0 %v1071
    %1256 = vmatpush.bf16.msra.mxu0 %v1070
    %1257 = vmatpush.bf16.msra.mxu0 %v1069
    %1258 = vmatpush.bf16.msra.mxu0 %v1068
    %1259 = vmatmul.bf16.gmra.mxu0 %v702
    %v1260 = vpop.f32.mrf.mxu0
    %v1261 = vadd.f32 %v1248, %v1260
    %v1262 = vpop.f32.mrf.mxu0
    %1263 = vdwg.mxu0
    %1264 = vmatpush.bf16.msra.mxu0 %v1083
    %1265 = vmatpush.bf16.msra.mxu0 %v1082
    %1266 = vmatpush.bf16.msra.mxu0 %v1081
    %1267 = vmatpush.bf16.msra.mxu0 %v1080
    %1268 = vmatpush.bf16.msra.mxu0 %v1079
    %1269 = vmatpush.bf16.msra.mxu0 %v1078
    %1270 = vmatpush.bf16.msra.mxu0 %v1077
    %1271 = vmatpush.bf16.msra.mxu0 %v1076
    %1272 = vmatmul.bf16.gmra.mxu0 %v703
    %v1273 = vpop.f32.mrf.mxu0
    %v1274 = vadd.f32 %v1261, %v1273
    %v1275 = vpop.f32.mrf.mxu0
    %1276 = vdwg.mxu0
    %1277 = vmatpush.bf16.msra.mxu0 %v1091
    %1278 = vmatpush.bf16.msra.mxu0 %v1090
    %1279 = vmatpush.bf16.msra.mxu0 %v1089
    %1280 = vmatpush.bf16.msra.mxu0 %v1088
    %1281 = vmatpush.bf16.msra.mxu0 %v1087
    %1282 = vmatpush.bf16.msra.mxu0 %v1086
    %1283 = vmatpush.bf16.msra.mxu0 %v1085
    %1284 = vmatpush.bf16.msra.mxu0 %v1084
    %1285 = vmatmul.bf16.gmra.mxu0 %v704
    %v1286 = vpop.f32.mrf.mxu0
    %v1287 = vadd.f32 %v1274, %v1286
    %v1288 = vpop.f32.mrf.mxu0
    %1289 = vdwg.mxu0
    %1290 = vmatpush.bf16.msra.mxu0 %v1099
    %1291 = vmatpush.bf16.msra.mxu0 %v1098
    %1292 = vmatpush.bf16.msra.mxu0 %v1097
    %1293 = vmatpush.bf16.msra.mxu0 %v1096
    %1294 = vmatpush.bf16.msra.mxu0 %v1095
    %1295 = vmatpush.bf16.msra.mxu0 %v1094
    %1296 = vmatpush.bf16.msra.mxu0 %v1093
    %1297 = vmatpush.bf16.msra.mxu0 %v1092
    %1298 = vmatmul.bf16.gmra.mxu0 %v705
    %v1299 = vpop.f32.mrf.mxu0
    %v1300 = vadd.f32 %v1287, %v1299
    %v1301 = vpop.f32.mrf.mxu0
    %1302 = vdwg.mxu0
    %1303 = vmatpush.bf16.msra.mxu0 %v1107
    %1304 = vmatpush.bf16.msra.mxu0 %v1106
    %1305 = vmatpush.bf16.msra.mxu0 %v1105
    %1306 = vmatpush.bf16.msra.mxu0 %v1104
    %1307 = vmatpush.bf16.msra.mxu0 %v1103
    %1308 = vmatpush.bf16.msra.mxu0 %v1102
    %1309 = vmatpush.bf16.msra.mxu0 %v1101
    %1310 = vmatpush.bf16.msra.mxu0 %v1100
    %1311 = vmatmul.bf16.gmra.mxu0 %v706
    %v1312 = vpop.f32.mrf.mxu0
    %v1313 = vadd.f32 %v1300, %v1312
    %v1314 = vpop.f32.mrf.mxu0
    %1315 = vdwg.mxu0
    %1316 = vmatpush.bf16.msra.mxu0 %v1115
    %1317 = vmatpush.bf16.msra.mxu0 %v1114
    %1318 = vmatpush.bf16.msra.mxu0 %v1113
    %1319 = vmatpush.bf16.msra.mxu0 %v1112
    %1320 = vmatpush.bf16.msra.mxu0 %v1111
    %1321 = vmatpush.bf16.msra.mxu0 %v1110
    %1322 = vmatpush.bf16.msra.mxu0 %v1109
    %1323 = vmatpush.bf16.msra.mxu0 %v1108
    %1324 = vmatmul.bf16.gmra.mxu0 %v709
    %v1325 = vpop.f32.mrf.mxu0
    %v1326 = vadd.f32 %v1313, %v1325
    %v1327 = vpop.f32.mrf.mxu0
    %1328 = vdwg.mxu0
    %1329 = vmatpush.bf16.msra.mxu0 %v1123
    %1330 = vmatpush.bf16.msra.mxu0 %v1122
    %1331 = vmatpush.bf16.msra.mxu0 %v1121
    %1332 = vmatpush.bf16.msra.mxu0 %v1120
    %1333 = vmatpush.bf16.msra.mxu0 %v1119
    %1334 = vmatpush.bf16.msra.mxu0 %v1118
    %1335 = vmatpush.bf16.msra.mxu0 %v1117
    %1336 = vmatpush.bf16.msra.mxu0 %v1116
    %1337 = vmatmul.bf16.gmra.mxu0 %v710
    %v1338 = vpop.f32.mrf.mxu0
    %v1339 = vadd.f32 %v1326, %v1338
    %v1340 = vpop.f32.mrf.mxu0
    %1341 = vdwg.mxu0
    %1342 = vmatpush.bf16.msra.mxu0 0
    %1343 = vmatpush.bf16.msra.mxu0 0
    %1344 = vmatpush.bf16.msra.mxu0 0
    %1345 = vmatpush.bf16.msra.mxu0 0
    %1346 = vmatpush.bf16.msra.mxu0 0
    %1347 = vmatpush.bf16.msra.mxu0 0
    %1348 = vmatpush.bf16.msra.mxu0 0
    %1349 = vmatpush.bf16.msra.mxu0 %v1210
    %1350 = vmatmul.bf16.gmra.mxu0 %v1206
    %v1351 = vpop.f32.mrf.mxu0
    %v1352 = vadd.f32 %v1339, %v1351
    %v1353 = vpop.f32.mrf.mxu0
    %1354 = vdwg.mxu0
    %v1356 = vrot.slane %v1352, 1
    %v1357 = vperm.slane %v1352, 0
    %v1358 = vperm.slane %v1356, 0
    %v1361 = vadd.f32 %v530, %v1357
    %v1362 = vadd.f32 %v532, %v1358
    %v1363 = vld [vmem:[%s4] sm:$0x1]
    %v1365 = vperm.slane %v1363, 0
    %v1367 = vadd.f32 %v1361, %v1365
    %v1368 = vadd.f32 %v1362, %v1365
    %v1369 = vmax.f32 %v1367, 0.0
    %v1370 = vmax.f32 %v1368, 0.0
    %v1371 = vld [vmem:[%s5] sm:$0x1]
    %v1373 = vperm.slane %v1371, 0
    %v1375 = vmul.f32 %v1369, %v1373
    %v1376 = vmul.f32 %v1370, %v1373
    %vm1377 = vcmask 523264
    %v1378 = vsel %vm1377, %v1375, 0.0
    %1379 = vadd.xlane.f32.xlu0 %v1378
    %v1380 = vpop.xlane.xlu0 %1379
    %v1381 = vsel %vm1377, %v1376, 0.0
    %1382 = vadd.xlane.f32.xlu0 %v1381
    %v1383 = vpop.xlane.xlu0 %1382
    %v1384 = vld [vmem:[#allocation2] sm:$0x1]
    %v1386 = vperm.slane %v1384, 0
    %1387 = vset.pattern.permute.xlu0 0
    %1388 = vperm.xlu0 %1387, %v1386
    %v1389 = vpop.permute.xlu0 %1388
    %v1391 = vadd.f32 %v1380, %v1389
    %v1392 = vadd.f32 %v1383, %v1389
    %v1395 = vlaneseq
    %v1396 = vand.u32 %v1395, 127
    %v1397 = vperm.slane %v1391, %v1396
    %v1398 = vperm.slane %v1392, %v1396
    %vm1399 = vcmask 1041409
    %v1400 = vsel %vm1399, %v1398, %v1397
    %vm1402 = vcmask 58368
    %1403 = vst.msk [vmem:[#allocation3] sm:$0x3] %vm1402, %v1400
    // Predicated region
    $region30: #{tpu_custom_call.1} parent=1 // pred_check
      _
    $region31: #{tpu_custom_call.1} parent=1 // pred_check_branch
      %1405 = sbr.rel (0) target = $region33
    $region32: #{tpu_custom_call.1} parent=1 // pred_region
      %1407 = vsyncadd [#allocation4], 0
      %s1409 = sshll.u32 [#allocation3], 4
      %s1410 = int_to_ptr.vmem [resolvable:$true] %s1409
      %s1411 = sshll.u32 %s7, 4
      %s1412 = int_to_ptr.hbm [resolvable:$true] %s1411
      %1414 = dma.vmem_to_hbm [thread:$0]  %s1410, 32, %s1412, [#allocation4]
    $region33: #{tpu_custom_call.1} parent=1 // pred_fallthru
      _
    // Predicated region
    $region34: #{tpu_custom_call.1} parent=1 // pred_check
      _
    $region35: #{tpu_custom_call.1} parent=1 // pred_check_branch
      %1416 = sbr.rel (0) target = $region37
    $region36: #{tpu_custom_call.1} parent=1 // pred_region
      %1418 = dma.done [#allocation4], 32
    $region37: #{tpu_custom_call.1} parent=1 // pred_fallthru
      _
    %1419 = vsyncpa [#allocation4], 1

</llo_original>
